<compile_context>
chip_gen: v6e
topology: v6e:2x2x1
jax: 0.10.0
libtpu: 0.0.40
codegen_flags: <defaults>
</compile_context>

<pallas_src>
import functools

import numpy as np
import jax
import jax.numpy as jnp
from jax import lax
from jax.experimental import pallas as pl
from jax.experimental.pallas import tpu as pltpu


# ---------------------------------------------------------------------------
# Fused kernel: conv (im2col matmul) + BN shift + ReLU + 3x3/s2/p1 max pool
# ---------------------------------------------------------------------------
def _fused_conv_bn_relu_pool_kernel(p_ref, w_ref, shift_ref, o_ref, *,
                                    strip_rows, pool_w):
    """One (batch element, pooled-row strip) per grid step.

    p_ref    : (1, 1, 4*Mt1, K)  parity-grouped im2col patches for this strip,
               Mt1 = (strip_rows+1)*pool_w.  Groups ordered EE, EO, OE, OO;
               each group has one leading "halo" pooled row (the previous
               strip's last pooled row; zeros for strip 0).
    w_ref    : (K, 128)          conv weight with BN scale folded in
    shift_ref: (1, 128)          BN shift (f32)
    o_ref    : (1, 1, Mt, 128)   pooled output block, Mt = strip_rows*pool_w
    """
    mt1 = (strip_rows + 1) * pool_w
    mt = strip_rows * pool_w
    cp = w_ref.shape[-1]

    # ---- conv: one fused MXU matmul, one BN-shift + ReLU epilogue ----------
    acc = jnp.dot(p_ref[0, 0], w_ref[...], preferred_element_type=jnp.float32)
    act = jnp.maximum(acc + shift_ref[...], 0.0)            # (4*Mt1, 128) f32

    ee = act[0 * mt1:1 * mt1]          # conv[2i,   2j  ]
    eo = act[1 * mt1:2 * mt1]          # conv[2i,   2j+1]
    oe = act[2 * mt1:3 * mt1]          # conv[2i+1, 2j  ]
    oo = act[3 * mt1:4 * mt1]          # conv[2i+1, 2j+1]

    # ---- masks --------------------------------------------------------------
    # Post-ReLU data >= 0 and every pool window contains the unshifted EE
    # element, so filling padding positions with 0 never changes the max.
    # pooled col 0 has no "left" neighbour (pool padding); no integer modulo.
    col0 = (lax.broadcasted_iota(jnp.int32, (strip_rows + 1, pool_w, cp), 1)
            .reshape(mt1, cp) == 0)
    # the halo pooled row of the FIRST strip is pool padding (conv row -1)
    halo_rows = jnp.where(pl.program_id(1) == 0, pool_w, 0)
    halo_pad = lax.broadcasted_iota(jnp.int32, (mt1, cp), 0) < halo_rows
    oe = jnp.where(halo_pad, 0.0, oe)
    oo = jnp.where(halo_pad, 0.0, oo)

    # ---- "col - 1" shifts via XLU roll (no scratch store / misaligned load) -
    eo_l = jnp.where(col0, 0.0, pltpu.roll(eo, shift=1, axis=0))   # EO[., j-1]
    oo_l = jnp.where(col0, 0.0, pltpu.roll(oo, shift=1, axis=0))   # OO[., j-1]

    # ---- 3x3 / stride 2 / pad 1 max pool on the parity decomposition --------
    # output local row r (1..strip_rows) covers conv rows {2R-1, 2R, 2R+1}:
    #   2R, 2R+1  -> slabs at local row r      (slice [pool_w:])
    #   2R-1      -> OE/OO at local row r - 1  (slice [:mt], halo included)
    cur = jnp.maximum(jnp.maximum(ee[pool_w:], eo[pool_w:]),
                      jnp.maximum(oe[pool_w:], oo[pool_w:]))
    cur = jnp.maximum(cur, jnp.maximum(eo_l[pool_w:], oo_l[pool_w:]))
    prev = jnp.maximum(jnp.maximum(oe[:mt], oo[:mt]), oo_l[:mt])

    o_ref[0, 0] = jnp.maximum(cur, prev).astype(o_ref.dtype)


# ---------------------------------------------------------------------------
# Forward pass: XLA glue builds the parity-grouped patch tensor; the hot path
# is one fused Pallas kernel per (image, pooled-row strip).
# ---------------------------------------------------------------------------
def initial_block_forward(x_nchw, conv_w, bn_w, bn_b, run_mean, run_var,
                          eps=1e-5, compute_dtype=jnp.bfloat16,
                          pool_rows_per_step=16):
    N, Cin, H, W = x_nchw.shape
    Cout, Cin_w, KH, KW = conv_w.shape
    assert Cin == Cin_w
    stride, padc = 2, 3
    OH = (H + 2 * padc - KH) // stride + 1
    OW = (W + 2 * padc - KW) // stride + 1
    if OH % 2 or OW % 2:
        # TODO(synk): parity-fused pooling assumes even conv-output extents
        # (true for typical even inputs, e.g. 224); odd sizes need one extra
        # boundary pooled row/col handled separately.
        raise NotImplementedError("fused pooling requires even conv output size")
    POH, POW = OH // 2, OW // 2
    POWp = -(-POW // 8) * 8                      # sublane-aligned pooled width
    S = max(1, min(pool_rows_per_step, POH))     # pooled rows per grid step
    NS = -(-POH // S)                            # row strips per image
    POHp = NS * S
    Mt1 = (S + 1) * POWp                         # rows per parity group (+halo)
    Mt = S * POWp
    K = KH * KW * Cin
    CP = 128                                     # lane-dense channel dim

    # --- XLA glue: parity-grouped im2col patch tensor -----------------------
    # TODO(synk): patch extraction is still XLA glue (~12x HBM read inflation
    # of the input plus an extra HBM round trip of the patch tensor); fully
    # in-kernel patch assembly needs manual DMA gather / lane<->sublane
    # relayout of the strided 7x7 windows (Cin=3) and is left for a follow-up.
    x_nhwc = jnp.transpose(x_nchw, (0, 2, 3, 1)).astype(compute_dtype)
    xp = jnp.pad(x_nhwc, ((0, 0), (padc, padc), (padc, padc), (0, 0)))

    groups = []
    for a in (0, 1):                 # conv-output row parity
        for b in (0, 1):             # conv-output col parity
            taps = []
            for kh in range(KH):
                for kw in range(KW):
                    h0 = 2 * a + kh
                    w0 = 2 * b + kw
                    taps.append(xp[:, h0:h0 + 4 * (POH - 1) + 1:4,
                                   w0:w0 + 4 * (POW - 1) + 1:4, :])
            groups.append(jnp.concatenate(taps, axis=-1))   # (N, POH, POW, K)
    g = jnp.stack(groups, axis=1)                            # (N, 4, POH, POW, K)
    # one zero halo row on top (pool padding), pad rows to POHp, cols to POWp
    g = jnp.pad(g, ((0, 0), (0, 0), (1, POHp - POH), (0, POWp - POW), (0, 0)))
    # per-strip windows with a 1-pooled-row halo (strips stay fully parallel)
    strips = [g[:, :, s * S:s * S + S + 1] for s in range(NS)]
    patches = jnp.stack(strips, axis=1).reshape(N, NS, 4 * Mt1, K)

    # --- weight / BN prep (tiny): fold BN scale into weights, pad to 128 ----
    scale = bn_w / jnp.sqrt(run_var + eps)
    shift = bn_b - run_mean * scale
    w_mat = jnp.transpose(conv_w, (2, 3, 1, 0)).reshape(K, Cout)   # (kh,kw,ci)
    w_p = jnp.zeros((K, CP), compute_dtype).at[:, :Cout].set(
        (w_mat * scale[None, :]).astype(compute_dtype))
    shift_p = jnp.zeros((1, CP), jnp.float32).at[0, :Cout].set(
        shift.astype(jnp.float32))

    kernel = functools.partial(_fused_conv_bn_relu_pool_kernel,
                               strip_rows=S, pool_w=POWp)
    pooled = pl.pallas_call(
        kernel,
        out_shape=jax.ShapeDtypeStruct((N, NS, Mt, CP), jnp.float32),
        grid_spec=pltpu.PrefetchScalarGridSpec(
            num_scalar_prefetch=0,
            grid=(N, NS),
            in_specs=[
                # NOTE: with strip-sized blocks, pipeline_mode=pl.Buffered(3)
                # on this spec is a further knob to hide DMA jitter.
                pl.BlockSpec((1, 1, 4 * Mt1, K), lambda n, s: (n, s, 0, 0)),
                pl.BlockSpec((K, CP), lambda n, s: (0, 0)),
                pl.BlockSpec((1, CP), lambda n, s: (0, 0)),
            ],
            out_specs=pl.BlockSpec((1, 1, Mt, CP), lambda n, s: (n, s, 0, 0)),
        ),
        compiler_params=pltpu.CompilerParams(
            dimension_semantics=("parallel", "parallel"),
            vmem_limit_bytes=48 * 1024 * 1024,   # headroom on v5e/v6e, <64MiB v7x
        ),
    )(patches, w_p, shift_p)

    out = pooled.reshape(N, POHp, POWp, CP)[:, :POH, :POW, :Cout]
    return jnp.transpose(out, (0, 3, 1, 2))      # back to NCHW


# ---------------------------------------------------------------------------
# Pure-JAX reference for verification
# ---------------------------------------------------------------------------
def reference_forward(x_nchw, conv_w, bn_w, bn_b, run_mean, run_var, eps=1e-5):
    y = lax.conv_general_dilated(
        x_nchw, conv_w, window_strides=(2, 2), padding=((3, 3), (3, 3)),
        dimension_numbers=("NCHW", "OIHW", "NCHW"))
    scale = bn_w / jnp.sqrt(run_var + eps)
    shift = bn_b - run_mean * scale
    y = y * scale.reshape(1, -1, 1, 1) + shift.reshape(1, -1, 1, 1)
    y = jnp.maximum(y, 0.0)
    return lax.reduce_window(
        y, -jnp.inf, lax.max,
        window_dimensions=(1, 1, 3, 3), window_strides=(1, 1, 2, 2),
        padding=((0, 0), (0, 0), (1, 1), (1, 1)))


if __name__ == "__main__":
    key = jax.random.PRNGKey(0)
    k_x, k_w, k_g, k_b, k_m, k_v = jax.random.split(key, 6)

    # small shapes consistent with the module (Cin=3 fixed by the conv)
    x = jax.random.normal(k_x, (2, 3, 16, 16), dtype=jnp.float32)
    conv_w = jax.random.normal(k_w, (64, 3, 7, 7), dtype=jnp.float32) * 0.05
    bn_w = 1.0 + 0.1 * jax.random.normal(k_g, (64,), jnp.float32)
    bn_b = 0.1 * jax.random.normal(k_b, (64,), jnp.float32)
    run_mean = 0.05 * jax.random.normal(k_m, (64,), jnp.float32)
    run_var = jax.random.uniform(k_v, (64,), jnp.float32, minval=0.5, maxval=1.5)

    fwd = jax.jit(initial_block_forward,
                  static_argnames=("compute_dtype", "pool_rows_per_step"))

    ref = reference_forward(x, conv_w, bn_w, bn_b, run_mean, run_var)

    # default path: bf16 patches/weights on the MXU, f32 accumulate + epilogue
    out = jax.block_until_ready(fwd(x, conv_w, bn_w, bn_b, run_mean, run_var))
    assert out.shape == (2, 64, 4, 4)
    np.testing.assert_allclose(np.asarray(out), np.asarray(ref),
                               rtol=5e-2, atol=5e-2)

    # f32 path: strict parity with the PyTorch module
    out_f32 = jax.block_until_ready(
        fwd(x, conv_w, bn_w, bn_b, run_mean, run_var,
            compute_dtype=jnp.float32))
    np.testing.assert_allclose(np.asarray(out_f32), np.asarray(ref),
                               rtol=2e-4, atol=2e-4)

    print("KERNEL_OK")
</pallas_src>

<mosaic_0001>
module attributes {stable_mosaic.version = 11 : i64} {
  func.func @_fused_conv_bn_relu_pool_kernel(%arg0: i32, %arg1: i32, %arg2: memref<1x1x160x147xbf16, #tpu.memory_space<vmem>>, %arg3: memref<147x128xbf16, #tpu.memory_space<vmem>>, %arg4: memref<1x128xf32, #tpu.memory_space<vmem>>, %arg5: memref<1x1x32x128xf32, #tpu.memory_space<vmem>>) attributes {dimension_semantics = [#tpu.dimension_semantics<parallel>, #tpu.dimension_semantics<parallel>], iteration_bounds = array<i64: 2, 1>, scalar_prefetch = 0 : i64, scratch_operands = 0 : i64, tpu.core_type = #tpu.core_type<tc>, window_params = [{transform_indices = @transform_0, window_bounds = array<i64: 1, 1, 160, 147>}, {pipeline_mode = #tpu.pipeline_mode<synchronous>, transform_indices = @transform_1, window_bounds = array<i64: 147, 128>}, {pipeline_mode = #tpu.pipeline_mode<synchronous>, transform_indices = @transform_2, window_bounds = array<i64: 1, 128>}, {transform_indices = @transform_3, window_bounds = array<i64: 1, 1, 32, 128>}]} {
    %c0 = arith.constant 0 : index
    %c0_0 = arith.constant 0 : index
    %c0_1 = arith.constant 0 : index
    %c0_2 = arith.constant 0 : index
    %0 = vector.load %arg2[%c0, %c0_0, %c0_1, %c0_2] : memref<1x1x160x147xbf16, #tpu.memory_space<vmem>>, vector<1x1x160x147xbf16>
    %1 = vector.shape_cast %0 : vector<1x1x160x147xbf16> to vector<160x147xbf16>
    %c0_3 = arith.constant 0 : index
    %c0_4 = arith.constant 0 : index
    %2 = vector.load %arg3[%c0_3, %c0_4] : memref<147x128xbf16, #tpu.memory_space<vmem>>, vector<147x128xbf16>
    %cst = arith.constant dense<0.000000e+00> : vector<160x128xf32>
    %3 = tpu.matmul %1, %2, %cst {dimension_numbers = #tpu.dot_dimension_numbers<[1], [0], [0], [1], [0, 0, 1, 1], [], []>} : vector<160x147xbf16>, vector<147x128xbf16>, vector<160x128xf32> -> vector<160x128xf32>
    %c0_5 = arith.constant 0 : index
    %c0_6 = arith.constant 0 : index
    %4 = vector.load %arg4[%c0_5, %c0_6] : memref<1x128xf32, #tpu.memory_space<vmem>>, vector<1x128xf32>
    %5 = vector.broadcast %4 : vector<1x128xf32> to vector<160x128xf32>
    %6 = arith.addf %3, %5 : vector<160x128xf32>
    %cst_7 = arith.constant 0.000000e+00 : f32
    %7 = vector.broadcast %cst_7 : f32 to vector<160x128xf32>
    %8 = arith.maximumf %6, %7 : vector<160x128xf32>
    %9 = vector.extract_strided_slice %8 {offsets = [0, 0], sizes = [40, 128], strides = [1, 1]} : vector<160x128xf32> to vector<40x128xf32>
    %10 = vector.extract_strided_slice %8 {offsets = [40, 0], sizes = [40, 128], strides = [1, 1]} : vector<160x128xf32> to vector<40x128xf32>
    %11 = vector.extract_strided_slice %8 {offsets = [80, 0], sizes = [40, 128], strides = [1, 1]} : vector<160x128xf32> to vector<40x128xf32>
    %12 = vector.extract_strided_slice %8 {offsets = [120, 0], sizes = [40, 128], strides = [1, 1]} : vector<160x128xf32> to vector<40x128xf32>
    %13 = tpu.iota {dimensions = array<i32: 1>} : vector<5x8x128xi32>
    %14 = vector.shape_cast %13 : vector<5x8x128xi32> to vector<40x128xi32>
    %c0_i32 = arith.constant 0 : i32
    %15 = vector.broadcast %c0_i32 : i32 to vector<40x128xi32>
    %16 = arith.cmpi eq, %14, %15 : vector<40x128xi32>
    %c0_i32_8 = arith.constant 0 : i32
    %17 = arith.cmpi eq, %arg1, %c0_i32_8 : i32
    %c8_i32 = arith.constant 8 : i32
    %c0_i32_9 = arith.constant 0 : i32
    %18 = arith.select %17, %c8_i32, %c0_i32_9 : i32
    %19 = tpu.iota {dimensions = array<i32: 0>} : vector<40x128xi32>
    %20 = vector.broadcast %18 : i32 to vector<40x128xi32>
    %21 = arith.cmpi slt, %19, %20 : vector<40x128xi32>
    %cst_10 = arith.constant 0.000000e+00 : f32
    %22 = vector.broadcast %cst_10 : f32 to vector<40x128xf32>
    %23 = arith.select %21, %22, %11 : vector<40x128xi1>, vector<40x128xf32>
    %cst_11 = arith.constant 0.000000e+00 : f32
    %24 = vector.broadcast %cst_11 : f32 to vector<40x128xf32>
    %25 = arith.select %21, %24, %12 : vector<40x128xi1>, vector<40x128xf32>
    %c1_i32 = arith.constant 1 : i32
    %26 = tpu.dynamic_rotate %10 by %c1_i32 dim 0 : vector<40x128xf32>, i32 -> vector<40x128xf32>
    %cst_12 = arith.constant 0.000000e+00 : f32
    %27 = vector.broadcast %cst_12 : f32 to vector<40x128xf32>
    %28 = arith.select %16, %27, %26 : vector<40x128xi1>, vector<40x128xf32>
    %c1_i32_13 = arith.constant 1 : i32
    %29 = tpu.dynamic_rotate %25 by %c1_i32_13 dim 0 : vector<40x128xf32>, i32 -> vector<40x128xf32>
    %cst_14 = arith.constant 0.000000e+00 : f32
    %30 = vector.broadcast %cst_14 : f32 to vector<40x128xf32>
    %31 = arith.select %16, %30, %29 : vector<40x128xi1>, vector<40x128xf32>
    %32 = vector.extract_strided_slice %9 {offsets = [8, 0], sizes = [32, 128], strides = [1, 1]} : vector<40x128xf32> to vector<32x128xf32>
    %33 = vector.extract_strided_slice %10 {offsets = [8, 0], sizes = [32, 128], strides = [1, 1]} : vector<40x128xf32> to vector<32x128xf32>
    %34 = arith.maximumf %32, %33 : vector<32x128xf32>
    %35 = vector.extract_strided_slice %23 {offsets = [8, 0], sizes = [32, 128], strides = [1, 1]} : vector<40x128xf32> to vector<32x128xf32>
    %36 = vector.extract_strided_slice %25 {offsets = [8, 0], sizes = [32, 128], strides = [1, 1]} : vector<40x128xf32> to vector<32x128xf32>
    %37 = arith.maximumf %35, %36 : vector<32x128xf32>
    %38 = arith.maximumf %34, %37 : vector<32x128xf32>
    %39 = vector.extract_strided_slice %28 {offsets = [8, 0], sizes = [32, 128], strides = [1, 1]} : vector<40x128xf32> to vector<32x128xf32>
    %40 = vector.extract_strided_slice %31 {offsets = [8, 0], sizes = [32, 128], strides = [1, 1]} : vector<40x128xf32> to vector<32x128xf32>
    %41 = arith.maximumf %39, %40 : vector<32x128xf32>
    %42 = arith.maximumf %38, %41 : vector<32x128xf32>
    %43 = vector.extract_strided_slice %23 {offsets = [0, 0], sizes = [32, 128], strides = [1, 1]} : vector<40x128xf32> to vector<32x128xf32>
    %44 = vector.extract_strided_slice %25 {offsets = [0, 0], sizes = [32, 128], strides = [1, 1]} : vector<40x128xf32> to vector<32x128xf32>
    %45 = arith.maximumf %43, %44 : vector<32x128xf32>
    %46 = vector.extract_strided_slice %31 {offsets = [0, 0], sizes = [32, 128], strides = [1, 1]} : vector<40x128xf32> to vector<32x128xf32>
    %47 = arith.maximumf %45, %46 : vector<32x128xf32>
    %48 = arith.maximumf %42, %47 : vector<32x128xf32>
    %c0_15 = arith.constant 0 : index
    %c0_16 = arith.constant 0 : index
    %c0_17 = arith.constant 0 : index
    %c0_18 = arith.constant 0 : index
    %49 = vector.load %arg5[%c0_15, %c0_16, %c0_17, %c0_18] : memref<1x1x32x128xf32, #tpu.memory_space<vmem>>, vector<1x1x32x128xf32>
    %50 = vector.shape_cast %49 : vector<1x1x32x128xf32> to vector<32x128xf32>
    %51 = vector.shape_cast %48 : vector<32x128xf32> to vector<1x1x32x128xf32>
    tpu.vector_store %arg5[%c0_15, %c0_16, %c0_17, %c0_18], %51 {strides = array<i32>} : memref<1x1x32x128xf32, #tpu.memory_space<vmem>>, vector<1x1x32x128xf32>,
    return
  }
  func.func @transform_0(%arg0: i32, %arg1: i32) -> (i32, i32, i32, i32) {
    %c0_i32 = arith.constant 0 : i32
    %c0_i32_0 = arith.constant 0 : i32
    %c0_i32_1 = arith.constant 0 : i32
    return %arg0, %arg1, %c0_i32, %c0_i32_0 : i32, i32, i32, i32
  }
  func.func @transform_1(%arg0: i32, %arg1: i32) -> (i32, i32) {
    %c0_i32 = arith.constant 0 : i32
    %c0_i32_0 = arith.constant 0 : i32
    %c0_i32_1 = arith.constant 0 : i32
    return %c0_i32, %c0_i32_0 : i32, i32
  }
  func.func @transform_2(%arg0: i32, %arg1: i32) -> (i32, i32) {
    %c0_i32 = arith.constant 0 : i32
    %c0_i32_0 = arith.constant 0 : i32
    %c0_i32_1 = arith.constant 0 : i32
    return %c0_i32, %c0_i32_0 : i32, i32
  }
  func.func @transform_3(%arg0: i32, %arg1: i32) -> (i32, i32, i32, i32) {
    %c0_i32 = arith.constant 0 : i32
    %c0_i32_0 = arith.constant 0 : i32
    %c0_i32_1 = arith.constant 0 : i32
    return %arg0, %arg1, %c0_i32, %c0_i32_0 : i32, i32, i32, i32
  }
}

</mosaic_0001>

<llo_original>
// kernel: initial_block_forward.1
$region0: #{initial_block_forward.1}
  #allocation0 [shape = 'u32[]', space=smem, size = 0x4, offset = 0x4, fixed_abs, tag = 'smem constant byte address 0x4 - core index']
  #allocation1 [shape = 'u32[144,128]{1,0:T(1,128)}', space=vmem, size = 0x12000, scoped, tag = 'internal scratch']
  %s0 = inlined_call_operand.vmem [shape: bf16[2,1,160,147], index: 0, kind: input, shape index: {}]
  %s1 = inlined_call_operand.vmem [shape: bf16[147,128], index: 1, kind: input, shape index: {}]
  %s2 = inlined_call_operand.vmem [shape: f32[1,128], index: 2, kind: input, shape index: {}]
  %s3 = inlined_call_operand.vmem [shape: f32[2,1,32,128], index: 3, kind: output, shape index: {}]
  %s4 = sld [smem:[#allocation0]]
  $region45: #{initial_block_forward.1} parent=0
    _
  %s6 = ssub.s32 1, %s4
  %s7 = scalar_select 0, %s6, %s4
  loop: start=0, step=1, limit=4
  $region2: #{initial_block_forward.1} parent=0 // loop_pre_header
    _
  $region3: #{initial_block_forward.1} parent=0 // loop_header
    %s9 = sphi 0, %s13
    %p10 = scmp.ge.s32.totalorder %s9, 4
    %s16 = sphi 0, %s28
    %s17 = sphi 0, %s24
    %s18 = sphi 0, %s16
    %s19 = sphi 0, %s17
    %s20 = sphi 0, %s18
    %s21 = sphi 0, %s19
    %s33 = sphi 0, %s35
    %s36 = sphi 0, %s33
    %s37 = sphi 0, %s36
    %s53 = sphi 0, %s37
    %s57 = sphi 0, %s57
    %s59 = sphi 0, %s57
    %s60 = sphi 0, %s59
    %s74 = sphi 0, %s60
    %s78 = sphi 0, %s78
    %s80 = sphi 0, %s78
    %s81 = sphi 0, %s80
    %s95 = sphi 0, %s81
    %s103 = sphi 0, %s105
    %s106 = sphi 0, %s103
    %s107 = sphi 0, %s106
    %s123 = sphi 0, %s107
  $region4: #{initial_block_forward.1} parent=0 // loop_header_branch
    %12 = sbr.rel (%p10) target = $region8
  $region5: #{initial_block_forward.1} parent=0 // loop_body
    %s14 = ssub.s32 %s9, 1
    %s15 = ssub.s32 %s9, 2
    %s22 = sadd.s32 1, %s17
    %p23 = scmp.ge.s32.totalorder %s22, 1
    %s24 = scalar_select %p23, 0, %s22
    %s25 = sadd.s32 1, %s16
    %s26 = scalar_select %p23, %s25, %s16
    %p27 = scmp.ge.s32.totalorder %s26, 2
    %s28 = scalar_select %p27, 0, %s26
    %s29 = ssub.s32 %s16, %s28
    %s30 = ssub.s32 %s17, %s24
    %s31 = sor.u32 %s29, %s30
    %p32 = scmp.eq.s32.totalorder %s31, 0
    %s34 = sadd.s32 %s33, 1
    %s35 = scalar_select %p32, %s33, %s34
    %p38 = pneg %p32
    %p39 = scmp.eq.s32.totalorder %s9, 1
    %p40 = por %p38, %p39
    %p41 = scmp.ne.s32.totalorder %s33, %s36
    %p42 = scmp.eq.s32.totalorder %s9, 0
    %p43 = por %p41, %p42
    %p44 = scmp.ne.s32.totalorder %s33, %s36
    %p45 = scmp.eq.s32.totalorder %s14, 1
    %p46 = por %p44, %p45
    %p47 = scmp.ne.s32.totalorder %s36, %s37
    %p48 = scmp.eq.s32.totalorder %s14, 0
    %p49 = por %p47, %p48
    %p50 = scmp.ne.s32.totalorder %s36, %s37
    %p51 = scmp.eq.s32.totalorder %s15, 1
    %p52 = por %p50, %p51
    %p54 = scmp.ne.s32.totalorder %s37, %s53
    %p55 = scmp.eq.s32.totalorder %s15, 0
    %p56 = por %p54, %p55
    %s58 = sadd.s32 %s57, 1
    %p61 = scmp.eq.s32.totalorder %s9, 1
    %p62 = scmp.ne.s32.totalorder %s57, %s59
    %p63 = scmp.eq.s32.totalorder %s9, 0
    %p64 = por %p62, %p63
    %p65 = scmp.ne.s32.totalorder %s57, %s59
    %p66 = scmp.eq.s32.totalorder %s14, 1
    %p67 = por %p65, %p66
    %p68 = scmp.ne.s32.totalorder %s59, %s60
    %p69 = scmp.eq.s32.totalorder %s14, 0
    %p70 = por %p68, %p69
    %p71 = scmp.ne.s32.totalorder %s59, %s60
    %p72 = scmp.eq.s32.totalorder %s15, 1
    %p73 = por %p71, %p72
    %p75 = scmp.ne.s32.totalorder %s60, %s74
    %p76 = scmp.eq.s32.totalorder %s15, 0
    %p77 = por %p75, %p76
    %s79 = sadd.s32 %s78, 1
    %p82 = scmp.eq.s32.totalorder %s9, 1
    %p83 = scmp.ne.s32.totalorder %s78, %s80
    %p84 = scmp.eq.s32.totalorder %s9, 0
    %p85 = por %p83, %p84
    %p86 = scmp.ne.s32.totalorder %s78, %s80
    %p87 = scmp.eq.s32.totalorder %s14, 1
    %p88 = por %p86, %p87
    %p89 = scmp.ne.s32.totalorder %s80, %s81
    %p90 = scmp.eq.s32.totalorder %s14, 0
    %p91 = por %p89, %p90
    %p92 = scmp.ne.s32.totalorder %s80, %s81
    %p93 = scmp.eq.s32.totalorder %s15, 1
    %p94 = por %p92, %p93
    %p96 = scmp.ne.s32.totalorder %s81, %s95
    %p97 = scmp.eq.s32.totalorder %s15, 0
    %p98 = por %p96, %p97
    %s99 = ssub.s32 %s16, %s28
    %s100 = ssub.s32 %s17, %s24
    %s101 = sor.u32 %s99, %s100
    %p102 = scmp.eq.s32.totalorder %s101, 0
    %s104 = sadd.s32 %s103, 1
    %s105 = scalar_select %p102, %s103, %s104
    %p108 = pneg %p102
    %p109 = scmp.eq.s32.totalorder %s9, 1
    %p110 = por %p108, %p109
    %p111 = scmp.ne.s32.totalorder %s103, %s106
    %p112 = scmp.eq.s32.totalorder %s9, 0
    %p113 = por %p111, %p112
    %p114 = scmp.ne.s32.totalorder %s103, %s106
    %p115 = scmp.eq.s32.totalorder %s14, 1
    %p116 = por %p114, %p115
    %p117 = scmp.ne.s32.totalorder %s106, %s107
    %p118 = scmp.eq.s32.totalorder %s14, 0
    %p119 = por %p117, %p118
    %p120 = scmp.ne.s32.totalorder %s106, %s107
    %p121 = scmp.eq.s32.totalorder %s15, 1
    %p122 = por %p120, %p121
    %p124 = scmp.ne.s32.totalorder %s107, %s123
    %p125 = scmp.eq.s32.totalorder %s15, 0
    %p126 = por %p124, %p125
    %p127 = scmp.le.s32.totalorder 1, %s9
    %p128 = scmp.lt.s32.totalorder %s9, 3
    %p129 = pnand %p127, %p128
    %p130 = pneg %p129
    // Predicated region
    $region9: #{initial_block_forward.1} parent=5 // pred_check
      _
    $region10: #{initial_block_forward.1} parent=5 // pred_check_branch
      %132 = sbr.rel (%p129) target = $region12
    $region11: #{initial_block_forward.1} parent=5 // pred_region
      %s133 = ssub.s32 %s9, 1
      // Predicated region
      $region13: #{initial_block_forward.1} parent=11 // pred_check
        %p134 = pneg %p70
      $region14: #{initial_block_forward.1} parent=11 // pred_check_branch
        %136 = sbr.rel (%p134) target = $region16
      $region15: #{initial_block_forward.1} parent=11 // pred_region
        _
      $region16: #{initial_block_forward.1} parent=11 // pred_fallthru
        _
      // Predicated region
      $region17: #{initial_block_forward.1} parent=11 // pred_check
        %p137 = pneg %p91
      $region18: #{initial_block_forward.1} parent=11 // pred_check_branch
        %139 = sbr.rel (%p137) target = $region20
      $region19: #{initial_block_forward.1} parent=11 // pred_region
        _
      $region20: #{initial_block_forward.1} parent=11 // pred_fallthru
        _
    $region12: #{initial_block_forward.1} parent=5 // pred_fallthru
      _
    %p140 = scmp.lt.s32.totalorder %s9, 2
    // Predicated region
    $region21: #{initial_block_forward.1} parent=5 // pred_check
      %p141 = pneg %p140
    $region22: #{initial_block_forward.1} parent=5 // pred_check_branch
      %143 = sbr.rel (%p141) target = $region24
    $region23: #{initial_block_forward.1} parent=5 // pred_region
      // Predicated region
      $region25: #{initial_block_forward.1} parent=23 // pred_check
        %p144 = pneg %p43
      $region26: #{initial_block_forward.1} parent=23 // pred_check_branch
        %146 = sbr.rel (%p144) target = $region28
      $region27: #{initial_block_forward.1} parent=23 // pred_region
        %p147 = scmp.lt.s32.totalorder %s16, 1
        %s148 = scalar_select %p147, %s16, 1
        %p149 = scmp.lt.s32.totalorder %s17, 0
        %s150 = scalar_select %p149, %s17, 0
        %s151 = smul.addr %s150, 40
        %s152 = smul.addr %s148, 40
        %s153 = sadd.s32 %s151, %s152
        %s154 = smul.addr %s153, 4
        %s155 = scalar_lea.vmem %s0, %s154
      $region28: #{initial_block_forward.1} parent=23 // pred_fallthru
        _
    $region24: #{initial_block_forward.1} parent=5 // pred_fallthru
      _
    %p156 = scmp.le.s32.totalorder 1, %s9
    %p157 = scmp.lt.s32.totalorder %s9, 3
    %p158 = pnand %p156, %p157
    %p159 = pneg %p158
    // Predicated region
    $region29: #{initial_block_forward.1} parent=5 // pred_check
      _
    $region30: #{initial_block_forward.1} parent=5 // pred_check_branch
      %161 = sbr.rel (%p158) target = $region32
    $region31: #{initial_block_forward.1} parent=5 // pred_region
      %s162 = ssub.s32 %s9, 1
      %p163 = scmp.lt.s32.totalorder %s18, 1
      %s164 = scalar_select %p163, %s18, 1
      %p165 = scmp.lt.s32.totalorder %s19, 0
      %s166 = scalar_select %p165, %s19, 0
      %s167 = smul.addr %s166, 40
      %s168 = smul.addr %s164, 40
      %s169 = sadd.s32 %s167, %s168
      %s170 = smul.addr %s169, 4
      %s171 = scalar_lea.vmem %s0, %s170
      %p172 = pneg %p49
      %p173 = pneg %p46
      %p174 = pneg %p70
      %p175 = pneg %p67
      %p176 = pneg %p91
      %p177 = pneg %p88
      %p178 = pneg %p119
      %p179 = pneg %p116
      %p180 = scmp.lt.s32.totalorder %s18, 1
      %s181 = scalar_select %p180, %s18, 1
      %p182 = scmp.lt.s32.totalorder %s19, 0
      %s183 = scalar_select %p182, %s19, 0
      %s184 = smul.addr %s183, 4
      %s185 = smul.addr %s181, 4
      %s186 = sadd.s32 %s184, %s185
      %s187 = smul.addr %s186, 8
      %s188 = scalar_lea.vmem %s3, %s187
      %p189 = scmp.lt.s32.totalorder %s18, 1
      %s190 = scalar_select %p189, %s18, 1
      %p191 = scmp.lt.s32.totalorder %s19, 0
      %s192 = scalar_select %p191, %s19, 0
      %s193 = smul.addr %s192, 40
      %s194 = smul.addr %s190, 40
      %s195 = sadd.s32 %s193, %s194
      %s196 = smul.addr %s195, 4
      %s197 = scalar_lea.vmem %s0, %s196
      %p198 = scmp.lt.s32.totalorder %s18, 1
      %s199 = scalar_select %p198, %s18, 1
      %p200 = scmp.lt.s32.totalorder %s19, 0
      %s201 = scalar_select %p200, %s19, 0
      %s202 = smul.addr %s201, 4
      %s203 = smul.addr %s199, 4
      %s204 = sadd.s32 %s202, %s203
      %s205 = smul.addr %s204, 8
      %s206 = scalar_lea.vmem %s3, %s205
      %v208 = vld [vmem:[%s197] sm:$0xff]
      %v209 = vld [vmem:[%s197 + $0x8] sm:$0xff]
      %v210 = vld [vmem:[%s197 + $0x10] sm:$0xff]
      %v211 = vld [vmem:[%s197 + $0x18] sm:$0xff]
      %v212 = vld [vmem:[%s197 + $0x20] sm:$0xff]
      %v213 = vld [vmem:[%s197 + $0x28] sm:$0xff]
      %v214 = vld [vmem:[%s197 + $0x30] sm:$0xff]
      %v215 = vld [vmem:[%s197 + $0x38] sm:$0xff]
      %v216 = vld [vmem:[%s197 + $0x40] sm:$0xff]
      %v217 = vld [vmem:[%s197 + $0x48] sm:$0xff]
      %v218 = vld [vmem:[%s197 + $0x50] sm:$0xff]
      %v219 = vld [vmem:[%s197 + $0x58] sm:$0xff]
      %v220 = vld [vmem:[%s197 + $0x60] sm:$0xff]
      %v221 = vld [vmem:[%s197 + $0x68] sm:$0xff]
      %v222 = vld [vmem:[%s197 + $0x70] sm:$0xff]
      %v223 = vld [vmem:[%s197 + $0x78] sm:$0xff]
      %v224 = vld [vmem:[%s197 + $0x80] sm:$0xff]
      %v225 = vld [vmem:[%s197 + $0x88] sm:$0xff]
      %v226 = vld [vmem:[%s197 + $0x90] sm:$0xff]
      %v227 = vld [vmem:[%s197 + $0x98] sm:$0xff]
      %v228 = vld [vmem:[%s1] sm:$0xf]
      %v229 = vld [vmem:[%s1 + $0x4] sm:$0xf]
      %v230 = vld [vmem:[%s1 + $0x8] sm:$0xf]
      %v231 = vld [vmem:[%s1 + $0xc] sm:$0xf]
      %v232 = vld [vmem:[%s1 + $0x10] sm:$0xf]
      %v233 = vld [vmem:[%s1 + $0x14] sm:$0xf]
      %v234 = vld [vmem:[%s1 + $0x18] sm:$0xf]
      %v235 = vld [vmem:[%s1 + $0x1c] sm:$0xf]
      %v236 = vld [vmem:[%s1 + $0x20] sm:$0xf]
      %v237 = vld [vmem:[%s1 + $0x24] sm:$0xf]
      %v238 = vld [vmem:[%s1 + $0x28] sm:$0xf]
      %v239 = vld [vmem:[%s1 + $0x2c] sm:$0xf]
      %v240 = vld [vmem:[%s1 + $0x30] sm:$0xf]
      %v241 = vld [vmem:[%s1 + $0x34] sm:$0xf]
      %v242 = vld [vmem:[%s1 + $0x38] sm:$0xf]
      %v243 = vld [vmem:[%s1 + $0x3c] sm:$0xf]
      %v244 = vld [vmem:[%s1 + $0x40] sm:$0xf]
      %v245 = vld [vmem:[%s1 + $0x44] sm:$0xf]
      %v246 = vld [vmem:[%s1 + $0x48] sm:$0x3]
      %v247 = vld [vmem:[%s2] sm:$0x1]
      %v249 = vlaneseq
      %v250 = vshrl.u32 %v249, 7
      %v251 = vsub.s32 0, %v250
      %v252 = vrot.slane %v247, %v251
      %v274 = vunpack.c.l.b16 %v208
      %v275 = vunpack.c.h.b16 %v208
      %v276 = vunpack.c.l.b16 %v209
      %v277 = vunpack.c.h.b16 %v209
      %v278 = vunpack.c.l.b16 %v210
      %v279 = vunpack.c.h.b16 %v210
      %v280 = vunpack.c.l.b16 %v211
      %v281 = vunpack.c.h.b16 %v211
      %v282 = vunpack.c.l.b16 %v212
      %v283 = vunpack.c.h.b16 %v212
      %v284 = vunpack.c.l.b16 %v213
      %v285 = vunpack.c.h.b16 %v213
      %v286 = vunpack.c.l.b16 %v214
      %v287 = vunpack.c.h.b16 %v214
      %v288 = vunpack.c.l.b16 %v215
      %v289 = vunpack.c.h.b16 %v215
      %v290 = vunpack.c.l.b16 %v216
      %v291 = vunpack.c.h.b16 %v216
      %v292 = vunpack.c.l.b16 %v217
      %v293 = vunpack.c.h.b16 %v217
      %v294 = vunpack.c.l.b16 %v218
      %v295 = vunpack.c.h.b16 %v218
      %v296 = vunpack.c.l.b16 %v219
      %v297 = vunpack.c.h.b16 %v219
      %v298 = vunpack.c.l.b16 %v220
      %v299 = vunpack.c.h.b16 %v220
      %v300 = vunpack.c.l.b16 %v221
      %v301 = vunpack.c.h.b16 %v221
      %v302 = vunpack.c.l.b16 %v222
      %v303 = vunpack.c.h.b16 %v222
      %v304 = vunpack.c.l.b16 %v223
      %v305 = vunpack.c.h.b16 %v223
      %v306 = vunpack.c.l.b16 %v224
      %v307 = vunpack.c.h.b16 %v224
      %v308 = vunpack.c.l.b16 %v225
      %v309 = vunpack.c.h.b16 %v225
      %v310 = vunpack.c.l.b16 %v226
      %v311 = vunpack.c.h.b16 %v226
      %v312 = vunpack.c.l.b16 %v227
      %v313 = vunpack.c.h.b16 %v227
      %v314 = vpack.c.b16 %v276, %v274
      %v315 = vpack.c.b16 %v277, %v275
      %v316 = vpack.c.b16 %v280, %v278
      %v317 = vpack.c.b16 %v281, %v279
      %v318 = vpack.c.b16 %v284, %v282
      %v319 = vpack.c.b16 %v285, %v283
      %v320 = vpack.c.b16 %v288, %v286
      %v321 = vpack.c.b16 %v289, %v287
      %v322 = vpack.c.b16 %v292, %v290
      %v323 = vpack.c.b16 %v293, %v291
      %v324 = vpack.c.b16 %v296, %v294
      %v325 = vpack.c.b16 %v297, %v295
      %v326 = vpack.c.b16 %v300, %v298
      %v327 = vpack.c.b16 %v301, %v299
      %v328 = vpack.c.b16 %v304, %v302
      %v329 = vpack.c.b16 %v305, %v303
      %v330 = vpack.c.b16 %v308, %v306
      %v331 = vpack.c.b16 %v309, %v307
      %v332 = vpack.c.b16 %v312, %v310
      %v333 = vpack.c.b16 %v313, %v311
      %v363 = vunpack.c.l.b16 %v228
      %v364 = vunpack.c.l.b16 %v229
      %v365 = vunpack.c.l.b16 %v230
      %v366 = vunpack.c.l.b16 %v231
      %v367 = vunpack.c.l.b16 %v232
      %v368 = vunpack.c.l.b16 %v233
      %v369 = vunpack.c.l.b16 %v234
      %v370 = vunpack.c.l.b16 %v235
      %v371 = vunpack.c.l.b16 %v236
      %v372 = vunpack.c.l.b16 %v237
      %v373 = vunpack.c.l.b16 %v238
      %v374 = vunpack.c.l.b16 %v239
      %v375 = vunpack.c.l.b16 %v240
      %v376 = vunpack.c.l.b16 %v241
      %v377 = vunpack.c.l.b16 %v242
      %v378 = vunpack.c.l.b16 %v243
      %v379 = vunpack.c.l.b16 %v244
      %v380 = vunpack.c.l.b16 %v245
      %v381 = vunpack.c.l.b16 %v246
      %v382 = vpack.c.b16 %v364, %v363
      %v383 = vpack.c.b16 %v366, %v365
      %v384 = vpack.c.b16 %v368, %v367
      %v385 = vpack.c.b16 %v370, %v369
      %v386 = vpack.c.b16 %v372, %v371
      %v387 = vpack.c.b16 %v374, %v373
      %v388 = vpack.c.b16 %v376, %v375
      %v389 = vpack.c.b16 %v378, %v377
      %v390 = vpack.c.b16 %v380, %v379
      %v391 = vpack.c.b16 %v381, %v381
      %vm401 = vcmask 154624
      %v403 = vsel %vm401, %v315, 0
      %v406 = vsel %vm401, %v317, 0
      %v409 = vsel %vm401, %v319, 0
      %v412 = vsel %vm401, %v321, 0
      %v415 = vsel %vm401, %v323, 0
      %v418 = vsel %vm401, %v325, 0
      %v421 = vsel %vm401, %v327, 0
      %v424 = vsel %vm401, %v329, 0
      %v427 = vsel %vm401, %v331, 0
      %v430 = vsel %vm401, %v333, 0
      %vm432 = vcmask 1040384
      %vm433 = vcmask 1041408
      %v434 = vsel %vm432, 4294967295, 65535
      %v435 = vsel %vm433, %v434, 0
      %v437 = vand.u32 %v391, %v435
      %439 = vmatprep.subr.bf16.mxu0 0
      %440 = vmatpush1.bf16.msra.mxu0 %v389
      %441 = vmatprep.subr.bf16.mxu0 0
      %442 = vmatpush1.bf16.msra.mxu0 %v388
      %443 = vmatprep.subr.bf16.mxu0 0
      %444 = vmatpush1.bf16.msra.mxu0 %v387
      %445 = vmatprep.subr.bf16.mxu0 0
      %446 = vmatpush1.bf16.msra.mxu0 %v386
      %447 = vmatprep.subr.bf16.mxu0 0
      %448 = vmatpush1.bf16.msra.mxu0 %v385
      %449 = vmatprep.subr.bf16.mxu0 0
      %450 = vmatpush1.bf16.msra.mxu0 %v384
      %451 = vmatprep.subr.bf16.mxu0 0
      %452 = vmatpush1.bf16.msra.mxu0 %v383
      %453 = vmatprep.subr.bf16.mxu0 0
      %454 = vmatpush1.bf16.msra.mxu0 %v382
      %455 = vmatprep.subr.bf16.mxu0 0
      %456 = vmatpush2.bf16.msra.mxu0 0
      %457 = vmatprep.subr.bf16.mxu0 0
      %458 = vmatpush2.bf16.msra.mxu0 0
      %459 = vmatprep.subr.bf16.mxu0 0
      %460 = vmatpush2.bf16.msra.mxu0 0
      %461 = vmatprep.subr.bf16.mxu0 0
      %462 = vmatpush2.bf16.msra.mxu0 0
      %463 = vmatprep.subr.bf16.mxu0 0
      %464 = vmatpush2.bf16.msra.mxu0 0
      %465 = vmatprep.subr.bf16.mxu0 0
      %466 = vmatpush2.bf16.msra.mxu0 0
      %467 = vmatprep.subr.bf16.mxu0 0
      %468 = vmatpush2.bf16.msra.mxu0 %v437
      %469 = vmatprep.subr.bf16.mxu0 0
      %470 = vmatpush2.bf16.msra.mxu0 %v390
      %471 = vmatprep.mubr.bf16.mxu0 %v403
      %472 = vmatmul.mubr.bf16.gmra.mxu0 %v314
      %v473 = vpop.f32.mrf.mxu0
      %v474 = vpop.f32.mrf.mxu0
      %v475 = vpop.f32.mrf.mxu0
      %v476 = vadd.f32 %v252, %v475
      %v477 = vpop.f32.mrf.mxu0
      %478 = vmatprep.mubr.bf16.mxu0 %v406
      %479 = vmatmul.mubr.bf16.gmra.mxu0 %v316
      %v480 = vpop.f32.mrf.mxu0
      %v481 = vadd.f32 %v252, %v480
      %v482 = vpop.f32.mrf.mxu0
      %v483 = vpop.f32.mrf.mxu0
      %v484 = vadd.f32 %v252, %v483
      %v485 = vpop.f32.mrf.mxu0
      %486 = vmatprep.mubr.bf16.mxu0 %v409
      %487 = vmatmul.mubr.bf16.gmra.mxu0 %v318
      %v488 = vpop.f32.mrf.mxu0
      %v489 = vadd.f32 %v252, %v488
      %v490 = vpop.f32.mrf.mxu0
      %v491 = vpop.f32.mrf.mxu0
      %v492 = vadd.f32 %v252, %v491
      %v493 = vpop.f32.mrf.mxu0
      %494 = vmatprep.mubr.bf16.mxu0 %v412
      %495 = vmatmul.mubr.bf16.gmra.mxu0 %v320
      %v496 = vpop.f32.mrf.mxu0
      %v497 = vadd.f32 %v252, %v496
      %v498 = vpop.f32.mrf.mxu0
      %v499 = vpop.f32.mrf.mxu0
      %v500 = vadd.f32 %v252, %v499
      %v501 = vpop.f32.mrf.mxu0
      %502 = vmatprep.mubr.bf16.mxu0 %v415
      %503 = vmatmul.mubr.bf16.gmra.mxu0 %v322
      %v504 = vpop.f32.mrf.mxu0
      %v505 = vadd.f32 %v252, %v504
      %v506 = vpop.f32.mrf.mxu0
      %v507 = vpop.f32.mrf.mxu0
      %v508 = vadd.f32 %v252, %v507
      %v509 = vpop.f32.mrf.mxu0
      %510 = vmatprep.mubr.bf16.mxu0 %v418
      %511 = vmatmul.mubr.bf16.gmra.mxu0 %v324
      %v512 = vpop.f32.mrf.mxu0
      %v513 = vadd.f32 %v252, %v512
      %v514 = vpop.f32.mrf.mxu0
      %v515 = vpop.f32.mrf.mxu0
      %v516 = vadd.f32 %v252, %v515
      %v517 = vpop.f32.mrf.mxu0
      %518 = vmatprep.mubr.bf16.mxu0 %v421
      %519 = vmatmul.mubr.bf16.gmra.mxu0 %v326
      %v520 = vpop.f32.mrf.mxu0
      %v521 = vadd.f32 %v252, %v520
      %v522 = vpop.f32.mrf.mxu0
      %v523 = vpop.f32.mrf.mxu0
      %v524 = vadd.f32 %v252, %v523
      %v525 = vpop.f32.mrf.mxu0
      %526 = vmatprep.mubr.bf16.mxu0 %v424
      %527 = vmatmul.mubr.bf16.gmra.mxu0 %v328
      %v528 = vpop.f32.mrf.mxu0
      %v529 = vadd.f32 %v252, %v528
      %v530 = vpop.f32.mrf.mxu0
      %v531 = vpop.f32.mrf.mxu0
      %v532 = vadd.f32 %v252, %v531
      %v533 = vpop.f32.mrf.mxu0
      %534 = vmatprep.mubr.bf16.mxu0 %v427
      %535 = vmatmul.mubr.bf16.gmra.mxu0 %v330
      %v536 = vpop.f32.mrf.mxu0
      %v537 = vadd.f32 %v252, %v536
      %v538 = vpop.f32.mrf.mxu0
      %v539 = vpop.f32.mrf.mxu0
      %v540 = vadd.f32 %v252, %v539
      %v541 = vpop.f32.mrf.mxu0
      %542 = vmatprep.mubr.bf16.mxu0 %v430
      %543 = vmatmul.mubr.bf16.gmra.mxu0 %v332
      %v544 = vpop.f32.mrf.mxu0
      %v545 = vadd.f32 %v252, %v544
      %v546 = vpop.f32.mrf.mxu0
      %v547 = vpop.f32.mrf.mxu0
      %v548 = vadd.f32 %v252, %v547
      %v549 = vpop.f32.mrf.mxu0
      %550 = vdwg.mxu0
      %v551 = vmax.f32 %v476, 0.0
      %v552 = vmax.f32 %v481, 0.0
      %v553 = vmax.f32 %v484, 0.0
      %v554 = vmax.f32 %v489, 0.0
      %v555 = vmax.f32 %v492, 0.0
      %v556 = vmax.f32 %v497, 0.0
      %v557 = vmax.f32 %v500, 0.0
      %v558 = vmax.f32 %v505, 0.0
      %v559 = vmax.f32 %v508, 0.0
      %v560 = vmax.f32 %v513, 0.0
      %v561 = vmax.f32 %v516, 0.0
      %v562 = vmax.f32 %v521, 0.0
      %v563 = vmax.f32 %v524, 0.0
      %v564 = vmax.f32 %v529, 0.0
      %v565 = vmax.f32 %v532, 0.0
      %v566 = vmax.f32 %v537, 0.0
      %v567 = vmax.f32 %v540, 0.0
      %v568 = vmax.f32 %v545, 0.0
      %v569 = vmax.f32 %v548, 0.0
      %v570 = vlaneseq
      %v571 = vshrl.u32 %v570, 7
      %vm572 = vcmp.eq.s32.totalorder %v571, 0
      %p573 = scmp.eq.s32.totalorder %s19, 0
      %s574 = scalar_select %p573, 8, 0
      %v575 = vadd.s32 %v571, 8
      %v576 = vadd.s32 %v571, 16
      %v577 = vadd.s32 %v571, 24
      %v578 = vadd.s32 %v571, 32
      %v579 = vstv %s574
      %vm580 = vcmp.lt.s32.totalorder %v571, %v579
      %vm581 = vcmp.lt.s32.totalorder %v575, %v579
      %vm582 = vcmp.lt.s32.totalorder %v576, %v579
      %vm583 = vcmp.lt.s32.totalorder %v577, %v579
      %vm584 = vcmp.lt.s32.totalorder %v578, %v579
      %v585 = vsel %vm580, 0.0, %v560
      %v586 = vsel %vm581, 0.0, %v561
      %v587 = vsel %vm582, 0.0, %v562
      %v588 = vsel %vm583, 0.0, %v563
      %v589 = vsel %vm584, 0.0, %v564
      %v590 = vsel %vm580, 0.0, %v565
      %v591 = vsel %vm581, 0.0, %v566
      %v592 = vsel %vm582, 0.0, %v567
      %v593 = vsel %vm583, 0.0, %v568
      %v594 = vsel %vm584, 0.0, %v569
      %v595 = vrot.slane %v555, 7
      %v596 = vrot.slane %v556, 7
      %v597 = vrot.slane %v557, 7
      %v598 = vrot.slane %v558, 7
      %v599 = vrot.slane %v559, 7
      %vm600 = vcmp.lt.s32.totalorder %v571, 1
      %v601 = vsel %vm600, %v598, %v599
      %v602 = vsel %vm600, %v597, %v598
      %v603 = vsel %vm600, %v596, %v597
      %v604 = vsel %vm600, %v595, %v596
      %v605 = vsel %vm572, 0.0, %v604
      %v606 = vsel %vm572, 0.0, %v603
      %v607 = vsel %vm572, 0.0, %v602
      %v608 = vsel %vm572, 0.0, %v601
      %v609 = vrot.slane %v590, 7
      %v610 = vrot.slane %v591, 7
      %v611 = vrot.slane %v592, 7
      %v612 = vrot.slane %v593, 7
      %v613 = vrot.slane %v594, 7
      %v614 = vsel %vm600, %v612, %v613
      %v615 = vsel %vm600, %v611, %v612
      %v616 = vsel %vm600, %v610, %v611
      %v617 = vsel %vm600, %v609, %v610
      %v618 = vsel %vm600, %v613, %v609
      %v619 = vsel %vm572, 0.0, %v618
      %v620 = vsel %vm572, 0.0, %v617
      %v621 = vsel %vm572, 0.0, %v616
      %v622 = vsel %vm572, 0.0, %v615
      %v623 = vsel %vm572, 0.0, %v614
      %v624 = vmax.f32 %v551, %v556
      %v625 = vmax.f32 %v552, %v557
      %v626 = vmax.f32 %v553, %v558
      %v627 = vmax.f32 %v554, %v559
      %v628 = vmax.f32 %v586, %v591
      %v629 = vmax.f32 %v587, %v592
      %v630 = vmax.f32 %v588, %v593
      %v631 = vmax.f32 %v589, %v594
      %v632 = vmax.f32 %v624, %v628
      %v633 = vmax.f32 %v625, %v629
      %v634 = vmax.f32 %v626, %v630
      %v635 = vmax.f32 %v627, %v631
      %v636 = vmax.f32 %v605, %v620
      %v637 = vmax.f32 %v606, %v621
      %v638 = vmax.f32 %v607, %v622
      %v639 = vmax.f32 %v608, %v623
      %v640 = vmax.f32 %v632, %v636
      %v641 = vmax.f32 %v633, %v637
      %v642 = vmax.f32 %v634, %v638
      %v643 = vmax.f32 %v635, %v639
      %v644 = vmax.f32 %v585, %v590
      %v645 = vmax.f32 %v644, %v619
      %v646 = vmax.f32 %v628, %v620
      %v647 = vmax.f32 %v629, %v621
      %v648 = vmax.f32 %v630, %v622
      %v649 = vmax.f32 %v640, %v645
      %v650 = vmax.f32 %v641, %v646
      %v651 = vmax.f32 %v642, %v647
      %v652 = vmax.f32 %v643, %v648
      %653 = vst [vmem:[%s206] sm:$0xff] %v649
      %654 = vst [vmem:[%s206 + $0x8] sm:$0xff] %v650
      %655 = vst [vmem:[%s206 + $0x10] sm:$0xff] %v651
      %656 = vst [vmem:[%s206 + $0x18] sm:$0xff] %v652
      %p657 = scmp.lt.s32.totalorder %s18, 1
      %s658 = scalar_select %p657, %s18, 1
      %p659 = scmp.lt.s32.totalorder %s19, 0
      %s660 = scalar_select %p659, %s19, 0
      %s661 = smul.addr %s660, 4
      %s662 = smul.addr %s658, 4
      %s663 = sadd.s32 %s661, %s662
      %s664 = smul.addr %s663, 8
      %s665 = scalar_lea.vmem %s3, %s664
      // Predicated region
      $region33: #{initial_block_forward.1} parent=31 // pred_check
        %p666 = pneg %p116
      $region34: #{initial_block_forward.1} parent=31 // pred_check_branch
        %668 = sbr.rel (%p666) target = $region36
      $region35: #{initial_block_forward.1} parent=31 // pred_region
        _
      $region36: #{initial_block_forward.1} parent=31 // pred_fallthru
        _
    $region32: #{initial_block_forward.1} parent=5 // pred_fallthru
      _
    %p669 = scmp.le.s32.totalorder 2, %s9
    // Predicated region
    $region37: #{initial_block_forward.1} parent=5 // pred_check
      %p670 = pneg %p669
    $region38: #{initial_block_forward.1} parent=5 // pred_check_branch
      %672 = sbr.rel (%p670) target = $region40
    $region39: #{initial_block_forward.1} parent=5 // pred_region
      %s673 = ssub.s32 %s9, 2
      // Predicated region
      $region41: #{initial_block_forward.1} parent=39 // pred_check
        %p674 = pneg %p122
      $region42: #{initial_block_forward.1} parent=39 // pred_check_branch
        %676 = sbr.rel (%p674) target = $region44
      $region43: #{initial_block_forward.1} parent=39 // pred_region
        %p677 = scmp.lt.s32.totalorder %s20, 1
        %s678 = scalar_select %p677, %s20, 1
        %p679 = scmp.lt.s32.totalorder %s21, 0
        %s680 = scalar_select %p679, %s21, 0
        %s681 = smul.addr %s680, 4
        %s682 = smul.addr %s678, 4
        %s683 = sadd.s32 %s681, %s682
        %s684 = smul.addr %s683, 8
        %s685 = scalar_lea.vmem %s3, %s684
      $region44: #{initial_block_forward.1} parent=39 // pred_fallthru
        _
    $region40: #{initial_block_forward.1} parent=5 // pred_fallthru
      _
  $region6: #{initial_block_forward.1} parent=0 // loop_footer
    %s13 = sadd.s32 1, %s9
  $region7: #{initial_block_forward.1} parent=0 // loop_footer_branch
    %8 = sbr.rel target = $region3
  $region8: #{initial_block_forward.1} parent=0 // loop_exit
    _

</llo_original>
